<compile_context>
chip_gen: v7x
topology: tpu7x:2x2x1
jax: 0.10.0
libtpu: 0.0.40
codegen_flags: <defaults>
</compile_context>

<pallas_src>
import functools

import jax
import jax.numpy as jnp
from jax.experimental import pallas as pl
from jax.experimental.pallas import tpu as pltpu

_MARGIN = 1.0
_PAIR_EPS = 1e-6
_LOG_CLAMP = -100.0


def _make_loss_kernel(num_k, inv_n, inv_b, binary_targets):
    """grid = (num_parallel, num_k); axis 1 is the streaming feature reduction."""

    def kernel(z1_ref, z2_ref, label_ref, p1_ref, x1_ref, p2_ref, x2_ref,
               out_ref, acc_ref):
        p_id = pl.program_id(0)
        k_id = pl.program_id(1)

        # ---- init per-parallel-block accumulators ----
        @pl.when(k_id == 0)
        def _():
            acc_ref[0] = jnp.float32(0.0)   # running sum of BCE log terms
            acc_ref[1] = jnp.float32(0.0)   # contrastive sum (only block p==0 fills it)

        # ---- contrastive term: computed exactly once, on grid block (0, 0) ----
        @pl.when(jnp.logical_and(p_id == 0, k_id == 0))
        def _():
            z1 = z1_ref[...].astype(jnp.float32)
            z2 = z2_ref[...].astype(jnp.float32)
            lab = label_ref[...].astype(jnp.float32)              # (B, 1)
            diff = (z1 - z2) + _PAIR_EPS                          # F.pairwise_distance eps
            d2 = jnp.sum(diff * diff, axis=-1, keepdims=True)     # (B, 1)
            d = jnp.sqrt(d2)
            hinge = jnp.maximum(_MARGIN - d, 0.0)
            acc_ref[1] = jnp.sum(lab * d2 + (1.0 - lab) * hinge * hinge)

        # ---- streaming BCE partial sums over this (B, TILE_F) feature tile ----
        def log_term_sum(p_ref, x_ref):
            p = p_ref[...].astype(jnp.float32)
            x = x_ref[...].astype(jnp.float32)
            if binary_targets:
                # hard {0,1} targets: 1 log/element instead of 2 (EUP is the scarce slot)
                t = jnp.maximum(jnp.log(jnp.where(x > 0.5, p, 1.0 - p)), _LOG_CLAMP)
            else:
                # exact nn.BCELoss semantics for soft targets (incl. -100 clamp)
                t = (x * jnp.maximum(jnp.log(p), _LOG_CLAMP)
                     + (1.0 - x) * jnp.maximum(jnp.log(1.0 - p), _LOG_CLAMP))
            return jnp.sum(t)

        acc_ref[0] = (acc_ref[0]
                      + log_term_sum(p1_ref, x1_ref)
                      + log_term_sum(p2_ref, x2_ref))

        # ---- finalize: each parallel block writes its scaled partial exactly once ----
        @pl.when(k_id == num_k - 1)
        def _():
            partial = -acc_ref[0] * inv_n + acc_ref[1] * inv_b
            out_ref[...] = jnp.broadcast_to(partial, out_ref.shape).astype(out_ref.dtype)

    return kernel


def loss_forward(z1, z2, p1, p2, x1, x2, label, *, binary_targets=False,
                 tile_f=512, num_parallel=2):
    """JAX wrapper mirroring Loss.forward. p*/x* are NCHW; z* are (B, D)."""
    B = p1.shape[0]
    z1 = z1.reshape(B, -1)
    z2 = z2.reshape(B, -1)
    D = z1.shape[-1]
    p1f = p1.reshape(B, -1)
    p2f = p2.reshape(B, -1)
    x1f = x1.reshape(B, -1)
    x2f = x2.reshape(B, -1)
    F = p1f.shape[1]
    if not (p2f.shape[1] == F and x1f.shape[1] == F and x2f.shape[1] == F):
        raise ValueError("p1/p2/x1/x2 must share the same flattened feature size")
    labelf = label.reshape(B, 1).astype(jnp.float32)

    # --- tiling: lane-dense feature tiles (multiple of 128), sharded over cores ---
    f128 = -(-F // 128) * 128
    tile_f = max(128, min((tile_f // 128) * 128, f128))
    if f128 < num_parallel * tile_f:
        num_parallel = 1
    chunk = num_parallel * tile_f
    F_pad = -(-F // chunk) * chunk
    K = F_pad // chunk                      # feature tiles per parallel block

    # pad with (p=1, x=1): each padded element contributes exactly 0 to the BCE sum
    def pad_feat(a):
        if F_pad == F:
            return a
        return jnp.pad(a, ((0, 0), (0, F_pad - F)), constant_values=1.0)

    p1f, p2f, x1f, x2f = pad_feat(p1f), pad_feat(p2f), pad_feat(x1f), pad_feat(x2f)

    inv_n = 1.0 / float(B * F)              # nn.BCELoss 'mean' over UNpadded elements
    inv_b = 1.0 / float(B)

    const_map = lambda p, k: (0, 0)
    big_spec = pl.BlockSpec((B, tile_f), lambda p, k: (0, p * K + k))

    n_big = B * F_pad
    p_bytes = jnp.dtype(p1f.dtype).itemsize
    x_bytes = jnp.dtype(x1f.dtype).itemsize
    cost = pl.CostEstimate(
        flops=10 * 2 * n_big + 8 * B * D,
        transcendentals=(1 if binary_targets else 2) * 2 * n_big + B,
        bytes_accessed=2 * n_big * (p_bytes + x_bytes)
        + 2 * B * D * jnp.dtype(z1.dtype).itemsize
        + B * 4 + num_parallel * 8 * 128 * 4,
    )

    kernel = _make_loss_kernel(K, inv_n, inv_b, binary_targets)

    partials = pl.pallas_call(
        kernel,
        out_shape=jax.ShapeDtypeStruct((num_parallel, 8, 128), jnp.float32),
        grid_spec=pltpu.PrefetchScalarGridSpec(
            num_scalar_prefetch=0,
            grid=(num_parallel, K),
            in_specs=[
                pl.BlockSpec(z1.shape, const_map),    # z1  (resident)
                pl.BlockSpec(z2.shape, const_map),    # z2  (resident)
                pl.BlockSpec((B, 1), const_map),      # label (resident)
                big_spec,                             # p1 tile
                big_spec,                             # x1 tile
                big_spec,                             # p2 tile
                big_spec,                             # x2 tile
            ],
            out_specs=pl.BlockSpec((1, 8, 128), lambda p, k: (p, 0, 0)),
            scratch_shapes=[pltpu.SMEM((2,), jnp.float32)],
        ),
        compiler_params=pltpu.CompilerParams(
            dimension_semantics=("parallel", "arbitrary"),
            vmem_limit_bytes=32 * 1024 * 1024,   # portable across v5e/v6e/v7x
        ),
        cost_estimate=cost,
    )(z1, z2, labelf, p1f, x1f, p2f, x2f)

    # tiny final reduce over the per-core partials in plain XLA
    return jnp.sum(partials[:, 0, 0])


def loss_reference(z1, z2, p1, p2, x1, x2, label):
    """Pure-JAX reference matching nn.BCELoss + Hadsell contrastive."""
    def bce(p, x):
        b = p.shape[0]
        p = p.reshape(b, -1).astype(jnp.float32)
        x = x.reshape(b, -1).astype(jnp.float32)
        lp = jnp.maximum(jnp.log(p), _LOG_CLAMP)
        l1p = jnp.maximum(jnp.log(1.0 - p), _LOG_CLAMP)
        return -jnp.mean(x * lp + (1.0 - x) * l1p)

    z1 = z1.astype(jnp.float32)
    z2 = z2.astype(jnp.float32)
    lab = label.reshape(-1, 1).astype(jnp.float32)
    diff = (z1 - z2) + _PAIR_EPS
    d2 = jnp.sum(diff * diff, axis=-1, keepdims=True)
    d = jnp.sqrt(d2)
    hinge = jnp.maximum(_MARGIN - d, 0.0)
    contrastive = jnp.mean(lab * d2 + (1.0 - lab) * hinge * hinge)
    return bce(p1, x1) + bce(p2, x2) + contrastive


if __name__ == "__main__":
    # Small deterministic shapes consistent with a conv autoencoder + embeddings.
    B, C, H, W = 8, 4, 16, 16   # flattened image dim = 1024 (multiple of 128)
    D = 128                     # embedding dim

    key = jax.random.PRNGKey(0)
    k_z1, k_z2, k_p1, k_p2, k_x1, k_x2, k_lab = jax.random.split(key, 7)

    z1 = jax.random.normal(k_z1, (B, D), dtype=jnp.float32)
    z2 = jax.random.normal(k_z2, (B, D), dtype=jnp.float32)
    # predictions are probabilities in (0, 1) (post-sigmoid decoder output)
    p1 = jax.nn.sigmoid(jax.random.normal(k_p1, (B, C, H, W), dtype=jnp.float32))
    p2 = jax.nn.sigmoid(jax.random.normal(k_p2, (B, C, H, W), dtype=jnp.float32))
    # targets are binary images in {0, 1}
    x1 = jax.random.bernoulli(k_x1, 0.5, (B, C, H, W)).astype(jnp.float32)
    x2 = jax.random.bernoulli(k_x2, 0.5, (B, C, H, W)).astype(jnp.float32)
    label = jax.random.bernoulli(k_lab, 0.5, (B,)).astype(jnp.float32)

    # targets here are hard {0,1}, so the single-log fast path is exact
    fn = jax.jit(functools.partial(loss_forward, binary_targets=True))
    loss = fn(z1, z2, p1, p2, x1, x2, label)
    jax.block_until_ready(loss)

    ref = loss_reference(z1, z2, p1, p2, x1, x2, label)
    assert loss.shape == () and bool(jnp.isfinite(loss))
    assert bool(jnp.allclose(loss, ref, rtol=2e-5, atol=2e-5)), (float(loss), float(ref))
    print("KERNEL_OK")
</pallas_src>

<mosaic_0001>
module attributes {stable_mosaic.version = 11 : i64} {
  func.func @kernel(%arg0: i32, %arg1: i32, %arg2: memref<8x128xf32, #tpu.memory_space<vmem>>, %arg3: memref<8x128xf32, #tpu.memory_space<vmem>>, %arg4: memref<8x1xf32, #tpu.memory_space<vmem>>, %arg5: memref<8x512xf32, #tpu.memory_space<vmem>>, %arg6: memref<8x512xf32, #tpu.memory_space<vmem>>, %arg7: memref<8x512xf32, #tpu.memory_space<vmem>>, %arg8: memref<8x512xf32, #tpu.memory_space<vmem>>, %arg9: memref<1x8x128xf32, #tpu.memory_space<vmem>>, %arg10: memref<2xf32, #tpu.memory_space<smem>>) attributes {dimension_semantics = [#tpu.dimension_semantics<parallel>, #tpu.dimension_semantics<arbitrary>], iteration_bounds = array<i64: 2, 1>, scalar_prefetch = 0 : i64, scratch_operands = 1 : i64, tpu.core_type = #tpu.core_type<tc>, window_params = [{pipeline_mode = #tpu.pipeline_mode<synchronous>, transform_indices = @transform_0, window_bounds = array<i64: 8, 128>}, {pipeline_mode = #tpu.pipeline_mode<synchronous>, transform_indices = @transform_1, window_bounds = array<i64: 8, 128>}, {pipeline_mode = #tpu.pipeline_mode<synchronous>, transform_indices = @transform_2, window_bounds = array<i64: 8, 1>}, {transform_indices = @transform_3, window_bounds = array<i64: 8, 512>}, {transform_indices = @transform_4, window_bounds = array<i64: 8, 512>}, {transform_indices = @transform_5, window_bounds = array<i64: 8, 512>}, {transform_indices = @transform_6, window_bounds = array<i64: 8, 512>}, {transform_indices = @transform_7, window_bounds = array<i64: 1, 8, 128>}]} {
    %c0_i32 = arith.constant 0 : i32
    %0 = arith.cmpi eq, %arg1, %c0_i32 : i32
    %1 = arith.extui %0 : i1 to i32
    %c0_i32_0 = arith.constant 0 : i32
    %2 = arith.cmpi ne, %1, %c0_i32_0 : i32
    scf.if %2 {
      %cst_22 = arith.constant 0.000000e+00 : f32
      %c0_23 = arith.constant 0 : index
      %43 = memref.load %arg10[%c0_23] : memref<2xf32, #tpu.memory_space<smem>>
      memref.store %cst_22, %arg10[%c0_23] : memref<2xf32, #tpu.memory_space<smem>>
      %cst_24 = arith.constant 0.000000e+00 : f32
      %c1 = arith.constant 1 : index
      %44 = memref.load %arg10[%c1] : memref<2xf32, #tpu.memory_space<smem>>
      memref.store %cst_24, %arg10[%c1] : memref<2xf32, #tpu.memory_space<smem>>
    } else {
    }
    %c0_i32_1 = arith.constant 0 : i32
    %3 = arith.cmpi eq, %arg0, %c0_i32_1 : i32
    %c0_i32_2 = arith.constant 0 : i32
    %4 = arith.cmpi eq, %arg1, %c0_i32_2 : i32
    %5 = arith.andi %3, %4 : i1
    %6 = arith.extui %5 : i1 to i32
    %c0_i32_3 = arith.constant 0 : i32
    %7 = arith.cmpi ne, %6, %c0_i32_3 : i32
    scf.if %7 {
      %c0_22 = arith.constant 0 : index
      %c0_23 = arith.constant 0 : index
      %43 = vector.load %arg2[%c0_22, %c0_23] : memref<8x128xf32, #tpu.memory_space<vmem>>, vector<8x128xf32>
      %c0_24 = arith.constant 0 : index
      %c0_25 = arith.constant 0 : index
      %44 = vector.load %arg3[%c0_24, %c0_25] : memref<8x128xf32, #tpu.memory_space<vmem>>, vector<8x128xf32>
      %c0_26 = arith.constant 0 : index
      %c0_27 = arith.constant 0 : index
      %45 = vector.load %arg4[%c0_26, %c0_27] : memref<8x1xf32, #tpu.memory_space<vmem>>, vector<8x1xf32>
      %46 = arith.subf %43, %44 : vector<8x128xf32>
      %cst_28 = arith.constant 9.99999997E-7 : f32
      %47 = vector.broadcast %cst_28 : f32 to vector<8x128xf32>
      %48 = arith.addf %46, %47 : vector<8x128xf32>
      %49 = arith.mulf %48, %48 : vector<8x128xf32>
      %cst_29 = arith.constant dense<0.000000e+00> : vector<8xf32>
      %50 = vector.multi_reduction <add>, %49, %cst_29 [1] : vector<8x128xf32> to vector<8xf32>
      %51 = vector.shape_cast %50 : vector<8xf32> to vector<8x1xf32>
      %52 = math.sqrt %51 : vector<8x1xf32>
      %cst_30 = arith.constant 1.000000e+00 : f32
      %53 = vector.broadcast %cst_30 : f32 to vector<8x1xf32>
      %54 = arith.subf %53, %52 : vector<8x1xf32>
      %cst_31 = arith.constant 0.000000e+00 : f32
      %55 = vector.broadcast %cst_31 : f32 to vector<8x1xf32>
      %56 = arith.maximumf %54, %55 : vector<8x1xf32>
      %57 = arith.mulf %45, %51 : vector<8x1xf32>
      %cst_32 = arith.constant 1.000000e+00 : f32
      %58 = vector.broadcast %cst_32 : f32 to vector<8x1xf32>
      %59 = arith.subf %58, %45 : vector<8x1xf32>
      %60 = arith.mulf %59, %56 : vector<8x1xf32>
      %61 = arith.mulf %60, %56 : vector<8x1xf32>
      %62 = arith.addf %57, %61 : vector<8x1xf32>
      %63 = vector.shape_cast %62 : vector<8x1xf32> to vector<1x8x1xf32>
      %cst_33 = arith.constant dense<0.000000e+00> : vector<1xf32>
      %64 = vector.multi_reduction <add>, %63, %cst_33 [1, 2] : vector<1x8x1xf32> to vector<1xf32>
      %65 = vector.shape_cast %64 : vector<1xf32> to vector<1x1x1xf32>
      %66 = vector.extract %65[0, 0, 0] : f32 from vector<1x1x1xf32>
      %c1 = arith.constant 1 : index
      %67 = memref.load %arg10[%c1] : memref<2xf32, #tpu.memory_space<smem>>
      memref.store %66, %arg10[%c1] : memref<2xf32, #tpu.memory_space<smem>>
    } else {
    }
    %c0 = arith.constant 0 : index
    %8 = memref.load %arg10[%c0] : memref<2xf32, #tpu.memory_space<smem>>
    %c0_4 = arith.constant 0 : index
    %c0_5 = arith.constant 0 : index
    %9 = vector.load %arg5[%c0_4, %c0_5] : memref<8x512xf32, #tpu.memory_space<vmem>>, vector<8x512xf32>
    %c0_6 = arith.constant 0 : index
    %c0_7 = arith.constant 0 : index
    %10 = vector.load %arg6[%c0_6, %c0_7] : memref<8x512xf32, #tpu.memory_space<vmem>>, vector<8x512xf32>
    %cst = arith.constant 5.000000e-01 : f32
    %11 = vector.broadcast %cst : f32 to vector<8x512xf32>
    %12 = arith.cmpf ogt, %10, %11 : vector<8x512xf32>
    %cst_8 = arith.constant 1.000000e+00 : f32
    %13 = vector.broadcast %cst_8 : f32 to vector<8x512xf32>
    %14 = arith.subf %13, %9 : vector<8x512xf32>
    %15 = arith.select %12, %9, %14 : vector<8x512xi1>, vector<8x512xf32>
    %16 = math.log %15 : vector<8x512xf32>
    %cst_9 = arith.constant -1.000000e+02 : f32
    %17 = vector.broadcast %cst_9 : f32 to vector<8x512xf32>
    %18 = arith.maximumf %16, %17 : vector<8x512xf32>
    %19 = vector.shape_cast %18 : vector<8x512xf32> to vector<1x8x512xf32>
    %cst_10 = arith.constant dense<0.000000e+00> : vector<1xf32>
    %20 = vector.multi_reduction <add>, %19, %cst_10 [1, 2] : vector<1x8x512xf32> to vector<1xf32>
    %21 = vector.shape_cast %20 : vector<1xf32> to vector<1x1x1xf32>
    %22 = vector.extract %21[0, 0, 0] : f32 from vector<1x1x1xf32>
    %23 = arith.addf %8, %22 : f32
    %c0_11 = arith.constant 0 : index
    %c0_12 = arith.constant 0 : index
    %24 = vector.load %arg7[%c0_11, %c0_12] : memref<8x512xf32, #tpu.memory_space<vmem>>, vector<8x512xf32>
    %c0_13 = arith.constant 0 : index
    %c0_14 = arith.constant 0 : index
    %25 = vector.load %arg8[%c0_13, %c0_14] : memref<8x512xf32, #tpu.memory_space<vmem>>, vector<8x512xf32>
    %cst_15 = arith.constant 5.000000e-01 : f32
    %26 = vector.broadcast %cst_15 : f32 to vector<8x512xf32>
    %27 = arith.cmpf ogt, %25, %26 : vector<8x512xf32>
    %cst_16 = arith.constant 1.000000e+00 : f32
    %28 = vector.broadcast %cst_16 : f32 to vector<8x512xf32>
    %29 = arith.subf %28, %24 : vector<8x512xf32>
    %30 = arith.select %27, %24, %29 : vector<8x512xi1>, vector<8x512xf32>
    %31 = math.log %30 : vector<8x512xf32>
    %cst_17 = arith.constant -1.000000e+02 : f32
    %32 = vector.broadcast %cst_17 : f32 to vector<8x512xf32>
    %33 = arith.maximumf %31, %32 : vector<8x512xf32>
    %34 = vector.shape_cast %33 : vector<8x512xf32> to vector<1x8x512xf32>
    %cst_18 = arith.constant dense<0.000000e+00> : vector<1xf32>
    %35 = vector.multi_reduction <add>, %34, %cst_18 [1, 2] : vector<1x8x512xf32> to vector<1xf32>
    %36 = vector.shape_cast %35 : vector<1xf32> to vector<1x1x1xf32>
    %37 = vector.extract %36[0, 0, 0] : f32 from vector<1x1x1xf32>
    %38 = arith.addf %23, %37 : f32
    %c0_19 = arith.constant 0 : index
    %39 = memref.load %arg10[%c0_19] : memref<2xf32, #tpu.memory_space<smem>>
    memref.store %38, %arg10[%c0_19] : memref<2xf32, #tpu.memory_space<smem>>
    %c0_i32_20 = arith.constant 0 : i32
    %40 = arith.cmpi eq, %arg1, %c0_i32_20 : i32
    %41 = arith.extui %40 : i1 to i32
    %c0_i32_21 = arith.constant 0 : i32
    %42 = arith.cmpi ne, %41, %c0_i32_21 : i32
    scf.if %42 {
      %c0_22 = arith.constant 0 : index
      %43 = memref.load %arg10[%c0_22] : memref<2xf32, #tpu.memory_space<smem>>
      %cst_23 = arith.constant 0.000000e+00 : f32
      %44 = arith.subf %cst_23, %43 : f32
      %cst_24 = arith.constant 1.22070313E-4 : f32
      %45 = arith.mulf %44, %cst_24 : f32
      %c1 = arith.constant 1 : index
      %46 = memref.load %arg10[%c1] : memref<2xf32, #tpu.memory_space<smem>>
      %cst_25 = arith.constant 1.250000e-01 : f32
      %47 = arith.mulf %46, %cst_25 : f32
      %48 = arith.addf %45, %47 : f32
      %49 = vector.broadcast %48 : f32 to vector<1x8x128xf32>
      %c0_26 = arith.constant 0 : index
      %c0_27 = arith.constant 0 : index
      %c0_28 = arith.constant 0 : index
      %50 = vector.load %arg9[%c0_26, %c0_27, %c0_28] : memref<1x8x128xf32, #tpu.memory_space<vmem>>, vector<1x8x128xf32>
      tpu.vector_store %arg9[%c0_26, %c0_27, %c0_28], %49 {strides = array<i32>} : memref<1x8x128xf32, #tpu.memory_space<vmem>>, vector<1x8x128xf32>,
    } else {
    }
    return
  }
  func.func @transform_0(%arg0: i32, %arg1: i32) -> (i32, i32) {
    %c0_i32 = arith.constant 0 : i32
    %c0_i32_0 = arith.constant 0 : i32
    %c0_i32_1 = arith.constant 0 : i32
    return %c0_i32, %c0_i32_0 : i32, i32
  }
  func.func @transform_1(%arg0: i32, %arg1: i32) -> (i32, i32) {
    %c0_i32 = arith.constant 0 : i32
    %c0_i32_0 = arith.constant 0 : i32
    %c0_i32_1 = arith.constant 0 : i32
    return %c0_i32, %c0_i32_0 : i32, i32
  }
  func.func @transform_2(%arg0: i32, %arg1: i32) -> (i32, i32) {
    %c0_i32 = arith.constant 0 : i32
    %c0_i32_0 = arith.constant 0 : i32
    %c0_i32_1 = arith.constant 0 : i32
    return %c0_i32, %c0_i32_0 : i32, i32
  }
  func.func @transform_3(%arg0: i32, %arg1: i32) -> (i32, i32) {
    %c1_i32 = arith.constant 1 : i32
    %0 = arith.muli %arg0, %c1_i32 : i32
    %1 = arith.addi %0, %arg1 : i32
    %c0_i32 = arith.constant 0 : i32
    %c0_i32_0 = arith.constant 0 : i32
    return %c0_i32, %1 : i32, i32
  }
  func.func @transform_4(%arg0: i32, %arg1: i32) -> (i32, i32) {
    %c1_i32 = arith.constant 1 : i32
    %0 = arith.muli %arg0, %c1_i32 : i32
    %1 = arith.addi %0, %arg1 : i32
    %c0_i32 = arith.constant 0 : i32
    %c0_i32_0 = arith.constant 0 : i32
    return %c0_i32, %1 : i32, i32
  }
  func.func @transform_5(%arg0: i32, %arg1: i32) -> (i32, i32) {
    %c1_i32 = arith.constant 1 : i32
    %0 = arith.muli %arg0, %c1_i32 : i32
    %1 = arith.addi %0, %arg1 : i32
    %c0_i32 = arith.constant 0 : i32
    %c0_i32_0 = arith.constant 0 : i32
    return %c0_i32, %1 : i32, i32
  }
  func.func @transform_6(%arg0: i32, %arg1: i32) -> (i32, i32) {
    %c1_i32 = arith.constant 1 : i32
    %0 = arith.muli %arg0, %c1_i32 : i32
    %1 = arith.addi %0, %arg1 : i32
    %c0_i32 = arith.constant 0 : i32
    %c0_i32_0 = arith.constant 0 : i32
    return %c0_i32, %1 : i32, i32
  }
  func.func @transform_7(%arg0: i32, %arg1: i32) -> (i32, i32, i32) {
    %c0_i32 = arith.constant 0 : i32
    %c0_i32_0 = arith.constant 0 : i32
    %c0_i32_1 = arith.constant 0 : i32
    return %arg0, %c0_i32, %c0_i32_0 : i32, i32, i32
  }
}

</mosaic_0001>

<llo_original>
// kernel: loss_forward.1
$region0: #{loss_forward.1}
  #allocation0 [shape = 'u32[]', space=smem, size = 0x4, offset = 0x4, fixed_abs, tag = 'smem constant byte address 0x4 - core index']
  #allocation1 [shape = 'u32[144,128]{1,0:T(1,128)}', space=vmem, size = 0x12000, scoped, tag = 'internal scratch']
  #allocation2 [shape = 'f32[2]{0:T(128)}', space=smem, size = 0x200, scoped, tag = 'scratch operand']
  %s0 = inlined_call_operand.vmem [shape: f32[8,128], index: 0, kind: input, shape index: {}]
  %s1 = inlined_call_operand.vmem [shape: f32[8,128], index: 1, kind: input, shape index: {}]
  %s2 = inlined_call_operand.vmem [shape: f32[8,1], index: 2, kind: input, shape index: {}]
  %s3 = inlined_call_operand.vmem [shape: f32[8,1024], index: 3, kind: input, shape index: {}]
  %s4 = inlined_call_operand.vmem [shape: f32[8,1024], index: 4, kind: input, shape index: {}]
  %s5 = inlined_call_operand.vmem [shape: f32[8,1024], index: 5, kind: input, shape index: {}]
  %s6 = inlined_call_operand.vmem [shape: f32[8,1024], index: 6, kind: input, shape index: {}]
  %s7 = inlined_call_operand.vmem [shape: f32[2,8,128], index: 7, kind: output, shape index: {}]
  %s8 = sld [smem:[#allocation0]]
  $region73: #{loss_forward.1} parent=0
    _
  %s10 = ssub.s32 1, %s8
  %s11 = scalar_select 0, %s10, %s8
  loop: start=0, step=1, limit=4
  $region2: #{loss_forward.1} parent=0 // loop_pre_header
    _
  $region3: #{loss_forward.1} parent=0 // loop_header
    %s13 = sphi 0, %s17
    %p14 = scmp.ge.s32.totalorder %s13, 4
    %s20 = sphi 0, %s32
    %s21 = sphi 0, %s28
    %s22 = sphi 0, %s20
    %s23 = sphi 0, %s21
    %s24 = sphi 0, %s22
    %s25 = sphi 0, %s23
    %s33 = sphi 0, %s33
    %s35 = sphi 0, %s33
    %s36 = sphi 0, %s35
    %s50 = sphi 0, %s36
    %s54 = sphi 0, %s54
    %s56 = sphi 0, %s54
    %s57 = sphi 0, %s56
    %s71 = sphi 0, %s57
    %s75 = sphi 0, %s75
    %s77 = sphi 0, %s75
    %s78 = sphi 0, %s77
    %s92 = sphi 0, %s78
    %s100 = sphi 0, %s102
    %s103 = sphi 0, %s100
    %s104 = sphi 0, %s103
    %s120 = sphi 0, %s104
    %s128 = sphi 0, %s130
    %s131 = sphi 0, %s128
    %s132 = sphi 0, %s131
    %s148 = sphi 0, %s132
    %s156 = sphi 0, %s158
    %s159 = sphi 0, %s156
    %s160 = sphi 0, %s159
    %s176 = sphi 0, %s160
    %s184 = sphi 0, %s186
    %s187 = sphi 0, %s184
    %s188 = sphi 0, %s187
    %s204 = sphi 0, %s188
    %s210 = sphi 0, %s212
    %s213 = sphi 0, %s210
    %s214 = sphi 0, %s213
    %s230 = sphi 0, %s214
  $region4: #{loss_forward.1} parent=0 // loop_header_branch
    %16 = sbr.rel (%p14) target = $region8
  $region5: #{loss_forward.1} parent=0 // loop_body
    %s18 = ssub.s32 %s13, 1
    %s19 = ssub.s32 %s13, 2
    %s26 = sadd.s32 1, %s21
    %p27 = scmp.ge.s32.totalorder %s26, 1
    %s28 = scalar_select %p27, 0, %s26
    %s29 = sadd.s32 1, %s20
    %s30 = scalar_select %p27, %s29, %s20
    %p31 = scmp.ge.s32.totalorder %s30, 2
    %s32 = scalar_select %p31, 0, %s30
    %s34 = sadd.s32 %s33, 1
    %p37 = scmp.eq.s32.totalorder %s13, 1
    %p38 = scmp.ne.s32.totalorder %s33, %s35
    %p39 = scmp.eq.s32.totalorder %s13, 0
    %p40 = por %p38, %p39
    %p41 = scmp.ne.s32.totalorder %s33, %s35
    %p42 = scmp.eq.s32.totalorder %s18, 1
    %p43 = por %p41, %p42
    %p44 = scmp.ne.s32.totalorder %s35, %s36
    %p45 = scmp.eq.s32.totalorder %s18, 0
    %p46 = por %p44, %p45
    %p47 = scmp.ne.s32.totalorder %s35, %s36
    %p48 = scmp.eq.s32.totalorder %s19, 1
    %p49 = por %p47, %p48
    %p51 = scmp.ne.s32.totalorder %s36, %s50
    %p52 = scmp.eq.s32.totalorder %s19, 0
    %p53 = por %p51, %p52
    %s55 = sadd.s32 %s54, 1
    %p58 = scmp.eq.s32.totalorder %s13, 1
    %p59 = scmp.ne.s32.totalorder %s54, %s56
    %p60 = scmp.eq.s32.totalorder %s13, 0
    %p61 = por %p59, %p60
    %p62 = scmp.ne.s32.totalorder %s54, %s56
    %p63 = scmp.eq.s32.totalorder %s18, 1
    %p64 = por %p62, %p63
    %p65 = scmp.ne.s32.totalorder %s56, %s57
    %p66 = scmp.eq.s32.totalorder %s18, 0
    %p67 = por %p65, %p66
    %p68 = scmp.ne.s32.totalorder %s56, %s57
    %p69 = scmp.eq.s32.totalorder %s19, 1
    %p70 = por %p68, %p69
    %p72 = scmp.ne.s32.totalorder %s57, %s71
    %p73 = scmp.eq.s32.totalorder %s19, 0
    %p74 = por %p72, %p73
    %s76 = sadd.s32 %s75, 1
    %p79 = scmp.eq.s32.totalorder %s13, 1
    %p80 = scmp.ne.s32.totalorder %s75, %s77
    %p81 = scmp.eq.s32.totalorder %s13, 0
    %p82 = por %p80, %p81
    %p83 = scmp.ne.s32.totalorder %s75, %s77
    %p84 = scmp.eq.s32.totalorder %s18, 1
    %p85 = por %p83, %p84
    %p86 = scmp.ne.s32.totalorder %s77, %s78
    %p87 = scmp.eq.s32.totalorder %s18, 0
    %p88 = por %p86, %p87
    %p89 = scmp.ne.s32.totalorder %s77, %s78
    %p90 = scmp.eq.s32.totalorder %s19, 1
    %p91 = por %p89, %p90
    %p93 = scmp.ne.s32.totalorder %s78, %s92
    %p94 = scmp.eq.s32.totalorder %s19, 0
    %p95 = por %p93, %p94
    %s96 = sadd.s32 %s20, %s21
    %s97 = sadd.s32 %s32, %s28
    %s98 = ssub.s32 %s96, %s97
    %p99 = scmp.eq.s32.totalorder %s98, 0
    %s101 = sadd.s32 %s100, 1
    %s102 = scalar_select %p99, %s100, %s101
    %p105 = pneg %p99
    %p106 = scmp.eq.s32.totalorder %s13, 1
    %p107 = por %p105, %p106
    %p108 = scmp.ne.s32.totalorder %s100, %s103
    %p109 = scmp.eq.s32.totalorder %s13, 0
    %p110 = por %p108, %p109
    %p111 = scmp.ne.s32.totalorder %s100, %s103
    %p112 = scmp.eq.s32.totalorder %s18, 1
    %p113 = por %p111, %p112
    %p114 = scmp.ne.s32.totalorder %s103, %s104
    %p115 = scmp.eq.s32.totalorder %s18, 0
    %p116 = por %p114, %p115
    %p117 = scmp.ne.s32.totalorder %s103, %s104
    %p118 = scmp.eq.s32.totalorder %s19, 1
    %p119 = por %p117, %p118
    %p121 = scmp.ne.s32.totalorder %s104, %s120
    %p122 = scmp.eq.s32.totalorder %s19, 0
    %p123 = por %p121, %p122
    %s124 = sadd.s32 %s20, %s21
    %s125 = sadd.s32 %s32, %s28
    %s126 = ssub.s32 %s124, %s125
    %p127 = scmp.eq.s32.totalorder %s126, 0
    %s129 = sadd.s32 %s128, 1
    %s130 = scalar_select %p127, %s128, %s129
    %p133 = pneg %p127
    %p134 = scmp.eq.s32.totalorder %s13, 1
    %p135 = por %p133, %p134
    %p136 = scmp.ne.s32.totalorder %s128, %s131
    %p137 = scmp.eq.s32.totalorder %s13, 0
    %p138 = por %p136, %p137
    %p139 = scmp.ne.s32.totalorder %s128, %s131
    %p140 = scmp.eq.s32.totalorder %s18, 1
    %p141 = por %p139, %p140
    %p142 = scmp.ne.s32.totalorder %s131, %s132
    %p143 = scmp.eq.s32.totalorder %s18, 0
    %p144 = por %p142, %p143
    %p145 = scmp.ne.s32.totalorder %s131, %s132
    %p146 = scmp.eq.s32.totalorder %s19, 1
    %p147 = por %p145, %p146
    %p149 = scmp.ne.s32.totalorder %s132, %s148
    %p150 = scmp.eq.s32.totalorder %s19, 0
    %p151 = por %p149, %p150
    %s152 = sadd.s32 %s20, %s21
    %s153 = sadd.s32 %s32, %s28
    %s154 = ssub.s32 %s152, %s153
    %p155 = scmp.eq.s32.totalorder %s154, 0
    %s157 = sadd.s32 %s156, 1
    %s158 = scalar_select %p155, %s156, %s157
    %p161 = pneg %p155
    %p162 = scmp.eq.s32.totalorder %s13, 1
    %p163 = por %p161, %p162
    %p164 = scmp.ne.s32.totalorder %s156, %s159
    %p165 = scmp.eq.s32.totalorder %s13, 0
    %p166 = por %p164, %p165
    %p167 = scmp.ne.s32.totalorder %s156, %s159
    %p168 = scmp.eq.s32.totalorder %s18, 1
    %p169 = por %p167, %p168
    %p170 = scmp.ne.s32.totalorder %s159, %s160
    %p171 = scmp.eq.s32.totalorder %s18, 0
    %p172 = por %p170, %p171
    %p173 = scmp.ne.s32.totalorder %s159, %s160
    %p174 = scmp.eq.s32.totalorder %s19, 1
    %p175 = por %p173, %p174
    %p177 = scmp.ne.s32.totalorder %s160, %s176
    %p178 = scmp.eq.s32.totalorder %s19, 0
    %p179 = por %p177, %p178
    %s180 = sadd.s32 %s20, %s21
    %s181 = sadd.s32 %s32, %s28
    %s182 = ssub.s32 %s180, %s181
    %p183 = scmp.eq.s32.totalorder %s182, 0
    %s185 = sadd.s32 %s184, 1
    %s186 = scalar_select %p183, %s184, %s185
    %p189 = pneg %p183
    %p190 = scmp.eq.s32.totalorder %s13, 1
    %p191 = por %p189, %p190
    %p192 = scmp.ne.s32.totalorder %s184, %s187
    %p193 = scmp.eq.s32.totalorder %s13, 0
    %p194 = por %p192, %p193
    %p195 = scmp.ne.s32.totalorder %s184, %s187
    %p196 = scmp.eq.s32.totalorder %s18, 1
    %p197 = por %p195, %p196
    %p198 = scmp.ne.s32.totalorder %s187, %s188
    %p199 = scmp.eq.s32.totalorder %s18, 0
    %p200 = por %p198, %p199
    %p201 = scmp.ne.s32.totalorder %s187, %s188
    %p202 = scmp.eq.s32.totalorder %s19, 1
    %p203 = por %p201, %p202
    %p205 = scmp.ne.s32.totalorder %s188, %s204
    %p206 = scmp.eq.s32.totalorder %s19, 0
    %p207 = por %p205, %p206
    %s208 = ssub.s32 %s20, %s32
    %p209 = scmp.eq.s32.totalorder %s208, 0
    %s211 = sadd.s32 %s210, 1
    %s212 = scalar_select %p209, %s210, %s211
    %p215 = pneg %p209
    %p216 = scmp.eq.s32.totalorder %s13, 1
    %p217 = por %p215, %p216
    %p218 = scmp.ne.s32.totalorder %s210, %s213
    %p219 = scmp.eq.s32.totalorder %s13, 0
    %p220 = por %p218, %p219
    %p221 = scmp.ne.s32.totalorder %s210, %s213
    %p222 = scmp.eq.s32.totalorder %s18, 1
    %p223 = por %p221, %p222
    %p224 = scmp.ne.s32.totalorder %s213, %s214
    %p225 = scmp.eq.s32.totalorder %s18, 0
    %p226 = por %p224, %p225
    %p227 = scmp.ne.s32.totalorder %s213, %s214
    %p228 = scmp.eq.s32.totalorder %s19, 1
    %p229 = por %p227, %p228
    %p231 = scmp.ne.s32.totalorder %s214, %s230
    %p232 = scmp.eq.s32.totalorder %s19, 0
    %p233 = por %p231, %p232
    %p234 = scmp.le.s32.totalorder 1, %s13
    %p235 = scmp.lt.s32.totalorder %s13, 3
    %p236 = pnand %p234, %p235
    %p237 = pneg %p236
    // Predicated region
    $region9: #{loss_forward.1} parent=5 // pred_check
      _
    $region10: #{loss_forward.1} parent=5 // pred_check_branch
      %239 = sbr.rel (%p236) target = $region12
    $region11: #{loss_forward.1} parent=5 // pred_region
      %s240 = ssub.s32 %s13, 1
      // Predicated region
      $region13: #{loss_forward.1} parent=11 // pred_check
        %p241 = pneg %p46
      $region14: #{loss_forward.1} parent=11 // pred_check_branch
        %243 = sbr.rel (%p241) target = $region16
      $region15: #{loss_forward.1} parent=11 // pred_region
        _
      $region16: #{loss_forward.1} parent=11 // pred_fallthru
        _
      // Predicated region
      $region17: #{loss_forward.1} parent=11 // pred_check
        %p244 = pneg %p67
      $region18: #{loss_forward.1} parent=11 // pred_check_branch
        %246 = sbr.rel (%p244) target = $region20
      $region19: #{loss_forward.1} parent=11 // pred_region
        _
      $region20: #{loss_forward.1} parent=11 // pred_fallthru
        _
      // Predicated region
      $region21: #{loss_forward.1} parent=11 // pred_check
        %p247 = pneg %p88
      $region22: #{loss_forward.1} parent=11 // pred_check_branch
        %249 = sbr.rel (%p247) target = $region24
      $region23: #{loss_forward.1} parent=11 // pred_region
        _
      $region24: #{loss_forward.1} parent=11 // pred_fallthru
        _
    $region12: #{loss_forward.1} parent=5 // pred_fallthru
      _
    %p250 = scmp.lt.s32.totalorder %s13, 2
    // Predicated region
    $region25: #{loss_forward.1} parent=5 // pred_check
      %p251 = pneg %p250
    $region26: #{loss_forward.1} parent=5 // pred_check_branch
      %253 = sbr.rel (%p251) target = $region28
    $region27: #{loss_forward.1} parent=5 // pred_region
      // Predicated region
      $region29: #{loss_forward.1} parent=27 // pred_check
        %p254 = pneg %p110
      $region30: #{loss_forward.1} parent=27 // pred_check_branch
        %256 = sbr.rel (%p254) target = $region32
      $region31: #{loss_forward.1} parent=27 // pred_region
        %s257 = sadd.s32 %s20, %s21
        %s258 = smul.u32 4, %s257
        %p259 = scmp.lt.s32.totalorder %s258, 7
        %s260 = scalar_select %p259, %s258, 7
        %s261 = smul.addr %s260, 8
        %s262 = scalar_lea.vmem %s3, %s261
        %s263 = sadd.s32 %s20, %s21
        %s264 = smul.u32 4, %s263
      $region32: #{loss_forward.1} parent=27 // pred_fallthru
        _
      // Predicated region
      $region33: #{loss_forward.1} parent=27 // pred_check
        %p265 = pneg %p138
      $region34: #{loss_forward.1} parent=27 // pred_check_branch
        %267 = sbr.rel (%p265) target = $region36
      $region35: #{loss_forward.1} parent=27 // pred_region
        %s268 = sadd.s32 %s20, %s21
        %s269 = smul.u32 4, %s268
        %p270 = scmp.lt.s32.totalorder %s269, 7
        %s271 = scalar_select %p270, %s269, 7
        %s272 = smul.addr %s271, 8
        %s273 = scalar_lea.vmem %s4, %s272
        %s274 = sadd.s32 %s20, %s21
        %s275 = smul.u32 4, %s274
      $region36: #{loss_forward.1} parent=27 // pred_fallthru
        _
      // Predicated region
      $region37: #{loss_forward.1} parent=27 // pred_check
        %p276 = pneg %p166
      $region38: #{loss_forward.1} parent=27 // pred_check_branch
        %278 = sbr.rel (%p276) target = $region40
      $region39: #{loss_forward.1} parent=27 // pred_region
        %s279 = sadd.s32 %s20, %s21
        %s280 = smul.u32 4, %s279
        %p281 = scmp.lt.s32.totalorder %s280, 7
        %s282 = scalar_select %p281, %s280, 7
        %s283 = smul.addr %s282, 8
        %s284 = scalar_lea.vmem %s5, %s283
        %s285 = sadd.s32 %s20, %s21
        %s286 = smul.u32 4, %s285
      $region40: #{loss_forward.1} parent=27 // pred_fallthru
        _
      // Predicated region
      $region41: #{loss_forward.1} parent=27 // pred_check
        %p287 = pneg %p194
      $region42: #{loss_forward.1} parent=27 // pred_check_branch
        %289 = sbr.rel (%p287) target = $region44
      $region43: #{loss_forward.1} parent=27 // pred_region
        %s290 = sadd.s32 %s20, %s21
        %s291 = smul.u32 4, %s290
        %p292 = scmp.lt.s32.totalorder %s291, 7
        %s293 = scalar_select %p292, %s291, 7
        %s294 = smul.addr %s293, 8
        %s295 = scalar_lea.vmem %s6, %s294
        %s296 = sadd.s32 %s20, %s21
        %s297 = smul.u32 4, %s296
      $region44: #{loss_forward.1} parent=27 // pred_fallthru
        _
    $region28: #{loss_forward.1} parent=5 // pred_fallthru
      _
    %p298 = scmp.le.s32.totalorder 1, %s13
    %p299 = scmp.lt.s32.totalorder %s13, 3
    %p300 = pnand %p298, %p299
    %p301 = pneg %p300
    // Predicated region
    $region45: #{loss_forward.1} parent=5 // pred_check
      _
    $region46: #{loss_forward.1} parent=5 // pred_check_branch
      %303 = sbr.rel (%p300) target = $region48
    $region47: #{loss_forward.1} parent=5 // pred_region
      %s304 = ssub.s32 %s13, 1
      %p305 = pneg %p46
      %p306 = pneg %p43
      %p307 = pneg %p67
      %p308 = pneg %p64
      %p309 = pneg %p88
      %p310 = pneg %p85
      %s311 = sadd.s32 %s22, %s23
      %s312 = smul.u32 4, %s311
      %p313 = scmp.lt.s32.totalorder %s312, 7
      %s314 = scalar_select %p313, %s312, 7
      %s315 = smul.addr %s314, 8
      %s316 = scalar_lea.vmem %s3, %s315
      %p317 = pneg %p116
      %p318 = pneg %p113
      %s319 = sadd.s32 %s22, %s23
      %s320 = smul.u32 4, %s319
      %p321 = scmp.lt.s32.totalorder %s320, 7
      %s322 = scalar_select %p321, %s320, 7
      %s323 = smul.addr %s322, 8
      %s324 = scalar_lea.vmem %s4, %s323
      %p325 = pneg %p144
      %p326 = pneg %p141
      %s327 = sadd.s32 %s22, %s23
      %s328 = smul.u32 4, %s327
      %p329 = scmp.lt.s32.totalorder %s328, 7
      %s330 = scalar_select %p329, %s328, 7
      %s331 = smul.addr %s330, 8
      %s332 = scalar_lea.vmem %s5, %s331
      %p333 = pneg %p172
      %p334 = pneg %p169
      %s335 = sadd.s32 %s22, %s23
      %s336 = smul.u32 4, %s335
      %p337 = scmp.lt.s32.totalorder %s336, 7
      %s338 = scalar_select %p337, %s336, 7
      %s339 = smul.addr %s338, 8
      %s340 = scalar_lea.vmem %s6, %s339
      %p341 = pneg %p200
      %p342 = pneg %p197
      %p343 = pneg %p226
      %p344 = pneg %p223
      %p345 = scmp.lt.s32.totalorder %s22, 1
      %s346 = scalar_select %p345, %s22, 1
      %s347 = smul.addr %s346, 8
      %s348 = scalar_lea.vmem %s7, %s347
      %s349 = sadd.s32 %s22, %s23
      %s350 = smul.u32 4, %s349
      %p351 = scmp.lt.s32.totalorder %s350, 7
      %s352 = scalar_select %p351, %s350, 7
      %s353 = smul.addr %s352, 8
      %s354 = scalar_lea.vmem %s3, %s353
      %s355 = sadd.s32 %s22, %s23
      %s356 = smul.u32 4, %s355
      %s357 = sadd.s32 %s22, %s23
      %s358 = smul.u32 4, %s357
      %p359 = scmp.lt.s32.totalorder %s358, 7
      %s360 = scalar_select %p359, %s358, 7
      %s361 = smul.addr %s360, 8
      %s362 = scalar_lea.vmem %s4, %s361
      %s363 = sadd.s32 %s22, %s23
      %s364 = smul.u32 4, %s363
      %s365 = sadd.s32 %s22, %s23
      %s366 = smul.u32 4, %s365
      %p367 = scmp.lt.s32.totalorder %s366, 7
      %s368 = scalar_select %p367, %s366, 7
      %s369 = smul.addr %s368, 8
      %s370 = scalar_lea.vmem %s5, %s369
      %s371 = sadd.s32 %s22, %s23
      %s372 = smul.u32 4, %s371
      %s373 = sadd.s32 %s22, %s23
      %s374 = smul.u32 4, %s373
      %p375 = scmp.lt.s32.totalorder %s374, 7
      %s376 = scalar_select %p375, %s374, 7
      %s377 = smul.addr %s376, 8
      %s378 = scalar_lea.vmem %s6, %s377
      %s379 = sadd.s32 %s22, %s23
      %s380 = smul.u32 4, %s379
      %p381 = scmp.lt.s32.totalorder %s22, 1
      %s382 = scalar_select %p381, %s22, 1
      %s383 = smul.addr %s382, 8
      %s384 = scalar_lea.vmem %s7, %s383
      %p385 = scmp.eq.s32.totalorder %s23, 0
      // Predicated region
      $region49: #{loss_forward.1} parent=47 // pred_check
        %p386 = pneg %p385
      $region50: #{loss_forward.1} parent=47 // pred_check_branch
        %388 = sbr.rel (%p386) target = $region52
      $region51: #{loss_forward.1} parent=47 // pred_region
        %s389 = scalar_lea.smem [#allocation2], 0
        %390 = sst [smem:[%s389]] 0.0
        %s391 = scalar_lea.smem [#allocation2], 1
        %392 = sst [smem:[%s391]] 0.0
      $region52: #{loss_forward.1} parent=47 // pred_fallthru
        _
      %p393 = scmp.eq.s32.totalorder %s22, 0
      %p394 = pnand %p393, %p385
      %p395 = pneg %p394
      // Predicated region
      $region53: #{loss_forward.1} parent=47 // pred_check
        _
      $region54: #{loss_forward.1} parent=47 // pred_check_branch
        %397 = sbr.rel (%p394) target = $region56
      $region55: #{loss_forward.1} parent=47 // pred_region
        %v398 = vld [vmem:[%s0] sm:$0xff]
        %v399 = vld [vmem:[%s1] sm:$0xff]
        %v400 = vld [vmem:[%s2] sm:$0xff]
        %v401 = vsub.f32 %v398, %v399
        %v402 = vadd.f32 %v401, 1e-06
        %v403 = vmul.f32 %v402, %v402
        %404 = vadd.xlane.f32.xlu0 %v403
        %v405 = vpop.xlane.xlu0 %404
        %v406 = vrsqrt.pop %v405
        %v407 = vmul.f32 %v405, %v406
        %vm408 = vcmp.eq.f32.partialorder %v405, inf
        %v409 = vsel %vm408, %v405, %v407
        %vm410 = vcmp.eq.f32.partialorder %v405, 0.0
        %v411 = vand.u32 %v405, 2147483648
        %v412 = vsel %vm410, %v411, %v409
        %v413 = vsub.f32 1.0, %v412
        %v414 = vmax.f32 %v413, 0.0
        %v415 = vmul.f32 %v400, %v405
        %v416 = vsub.f32 1.0, %v400
        %v417 = vmul.f32 %v416, %v414
        %v418 = vmul.f32 %v417, %v414
        %v419 = vadd.f32 %v415, %v418
        %vm420 = vcmask 7168
        %v421 = vsel %vm420, %v419, 0.0
        %422 = vadd.xlane.f32.xlu0 %v421
        %v423 = vpop.xlane.xlu0 %422
        %v424 = vrot.slane %v423, 4
        %v425 = vadd.f32 %v423, %v424
        %v426 = vrot.slane %v425, 2
        %v427 = vadd.f32 %v425, %v426
        %v428 = vrot.slane %v427, 1
        %v429 = vadd.f32 %v427, %v428
        %s430 = vtos %v429
        %s431 = scalar_lea.smem [#allocation2], 1
        %432 = sst [smem:[%s431]] %s430
      $region56: #{loss_forward.1} parent=47 // pred_fallthru
        _
      %s433 = sld [smem:[#allocation2]]
      %v434 = vld [vmem:[%s354] sm:$0xff]
      %v435 = vld [vmem:[%s354 + $0x8] sm:$0xff]
      %v436 = vld [vmem:[%s354 + $0x10] sm:$0xff]
      %v437 = vld [vmem:[%s354 + $0x18] sm:$0xff]
      %v438 = vld [vmem:[%s362] sm:$0xff]
      %v439 = vld [vmem:[%s362 + $0x8] sm:$0xff]
      %v440 = vld [vmem:[%s362 + $0x10] sm:$0xff]
      %v441 = vld [vmem:[%s362 + $0x18] sm:$0xff]
      %vm442 = vcmp.gt.f32.partialorder %v438, 0.5
      %vm443 = vcmp.gt.f32.partialorder %v439, 0.5
      %vm444 = vcmp.gt.f32.partialorder %v440, 0.5
      %vm445 = vcmp.gt.f32.partialorder %v441, 0.5
      %v446 = vsub.f32 1.0, %v434
      %v447 = vsub.f32 1.0, %v435
      %v448 = vsub.f32 1.0, %v436
      %v449 = vsub.f32 1.0, %v437
      %v450 = vsel %vm442, %v434, %v446
      %v451 = vsel %vm443, %v435, %v447
      %v452 = vsel %vm444, %v436, %v448
      %v453 = vsel %vm445, %v437, %v449
      %v454 = vlog2.pop %v450
      %v455 = vmul.f32 %v454, 0.6931472
      %v456 = vlog2.pop %v451
      %v457 = vmul.f32 %v456, 0.6931472
      %v458 = vlog2.pop %v452
      %v459 = vmul.f32 %v458, 0.6931472
      %v460 = vlog2.pop %v453
      %v461 = vmul.f32 %v460, 0.6931472
      %v462 = vmax.f32 %v455, -100.0
      %v463 = vmax.f32 %v457, -100.0
      %v464 = vmax.f32 %v459, -100.0
      %v465 = vmax.f32 %v461, -100.0
      %v466 = vadd.f32 %v462, %v463
      %v467 = vadd.f32 %v466, %v464
      %v468 = vadd.f32 %v467, %v465
      %469 = vadd.xlane.f32.xlu0 %v468
      %v470 = vpop.xlane.xlu0 %469
      %v471 = vrot.slane %v470, 4
      %v472 = vadd.f32 %v470, %v471
      %v473 = vrot.slane %v472, 2
      %v474 = vadd.f32 %v472, %v473
      %v475 = vrot.slane %v474, 1
      %v476 = vadd.f32 %v474, %v475
      %s477 = vtos %v476
      %s478 = sadd.f32 %s433, %s477
      %v479 = vld [vmem:[%s370] sm:$0xff]
      %v480 = vld [vmem:[%s370 + $0x8] sm:$0xff]
      %v481 = vld [vmem:[%s370 + $0x10] sm:$0xff]
      %v482 = vld [vmem:[%s370 + $0x18] sm:$0xff]
      %v483 = vld [vmem:[%s378] sm:$0xff]
      %v484 = vld [vmem:[%s378 + $0x8] sm:$0xff]
      %v485 = vld [vmem:[%s378 + $0x10] sm:$0xff]
      %v486 = vld [vmem:[%s378 + $0x18] sm:$0xff]
      %vm487 = vcmp.gt.f32.partialorder %v483, 0.5
      %vm488 = vcmp.gt.f32.partialorder %v484, 0.5
      %vm489 = vcmp.gt.f32.partialorder %v485, 0.5
      %vm490 = vcmp.gt.f32.partialorder %v486, 0.5
      %v491 = vsub.f32 1.0, %v479
      %v492 = vsub.f32 1.0, %v480
      %v493 = vsub.f32 1.0, %v481
      %v494 = vsub.f32 1.0, %v482
      %v495 = vsel %vm487, %v479, %v491
      %v496 = vsel %vm488, %v480, %v492
      %v497 = vsel %vm489, %v481, %v493
      %v498 = vsel %vm490, %v482, %v494
      %v499 = vlog2.pop %v495
      %v500 = vmul.f32 %v499, 0.6931472
      %v501 = vlog2.pop %v496
      %v502 = vmul.f32 %v501, 0.6931472
      %v503 = vlog2.pop %v497
      %v504 = vmul.f32 %v503, 0.6931472
      %v505 = vlog2.pop %v498
      %v506 = vmul.f32 %v505, 0.6931472
      %v507 = vmax.f32 %v500, -100.0
      %v508 = vmax.f32 %v502, -100.0
      %v509 = vmax.f32 %v504, -100.0
      %v510 = vmax.f32 %v506, -100.0
      %v511 = vadd.f32 %v507, %v508
      %v512 = vadd.f32 %v511, %v509
      %v513 = vadd.f32 %v512, %v510
      %514 = vadd.xlane.f32.xlu0 %v513
      %v515 = vpop.xlane.xlu0 %514
      %v516 = vrot.slane %v515, 4
      %v517 = vadd.f32 %v515, %v516
      %v518 = vrot.slane %v517, 2
      %v519 = vadd.f32 %v517, %v518
      %v520 = vrot.slane %v519, 1
      %v521 = vadd.f32 %v519, %v520
      %s522 = vtos %v521
      %s523 = sadd.f32 %s478, %s522
      %s524 = scalar_lea.smem [#allocation2], 0
      %525 = sst [smem:[%s524]] %s523
      // Predicated region
      $region57: #{loss_forward.1} parent=47 // pred_check
        %p526 = pneg %p385
      $region58: #{loss_forward.1} parent=47 // pred_check_branch
        %528 = sbr.rel (%p526) target = $region60
      $region59: #{loss_forward.1} parent=47 // pred_region
        %s529 = sld [smem:[#allocation2]]
        %s530 = ssub.f32 0.0, %s529
        %s531 = smul.f32 %s530, 0.00012207031
        %s532 = sld [smem:[#allocation2 + $0x1]]
        %s533 = smul.f32 %s532, 0.125
        %s534 = sadd.f32 %s531, %s533
        %v535 = vstv %s534
        %536 = vst [vmem:[%s384] sm:$0xff] %v535
      $region60: #{loss_forward.1} parent=47 // pred_fallthru
        _
      %p537 = scmp.lt.s32.totalorder %s22, 1
      %s538 = scalar_select %p537, %s22, 1
      %s539 = smul.addr %s538, 8
      %s540 = scalar_lea.vmem %s7, %s539
      // Predicated region
      $region61: #{loss_forward.1} parent=47 // pred_check
        %p541 = pneg %p223
      $region62: #{loss_forward.1} parent=47 // pred_check_branch
        %543 = sbr.rel (%p541) target = $region64
      $region63: #{loss_forward.1} parent=47 // pred_region
        _
      $region64: #{loss_forward.1} parent=47 // pred_fallthru
        _
    $region48: #{loss_forward.1} parent=5 // pred_fallthru
      _
    %p544 = scmp.le.s32.totalorder 2, %s13
    // Predicated region
    $region65: #{loss_forward.1} parent=5 // pred_check
      %p545 = pneg %p544
    $region66: #{loss_forward.1} parent=5 // pred_check_branch
      %547 = sbr.rel (%p545) target = $region68
    $region67: #{loss_forward.1} parent=5 // pred_region
      %s548 = ssub.s32 %s13, 2
      // Predicated region
      $region69: #{loss_forward.1} parent=67 // pred_check
        %p549 = pneg %p229
      $region70: #{loss_forward.1} parent=67 // pred_check_branch
        %551 = sbr.rel (%p549) target = $region72
      $region71: #{loss_forward.1} parent=67 // pred_region
        %p552 = scmp.lt.s32.totalorder %s24, 1
        %s553 = scalar_select %p552, %s24, 1
        %s554 = smul.addr %s553, 8
        %s555 = scalar_lea.vmem %s7, %s554
      $region72: #{loss_forward.1} parent=67 // pred_fallthru
        _
    $region68: #{loss_forward.1} parent=5 // pred_fallthru
      _
  $region6: #{loss_forward.1} parent=0 // loop_footer
    %s17 = sadd.s32 1, %s13
  $region7: #{loss_forward.1} parent=0 // loop_footer_branch
    %12 = sbr.rel target = $region3
  $region8: #{loss_forward.1} parent=0 // loop_exit
    _

</llo_original>
